<compile_context>
chip_gen: v6e
topology: v6e:2x2x1
jax: 0.10.0
libtpu: 0.0.40
codegen_flags: <defaults>
</compile_context>

<pallas_src>
import functools

import jax
import jax.numpy as jnp
from jax.experimental import pallas as pl
from jax.experimental.pallas import tpu as pltpu

# ---------------------------------------------------------------------------
# Sizes (true model dims and their lane-padded versions)
# ---------------------------------------------------------------------------
EMBED = 100                     # true embedding dim D
H1, H2, OUT = 500, 200, 100     # RelationMetaLearner: 2D -> 500 -> 200 -> 100
D_PAD = 128                     # lane-padded D (zero padding is norm-neutral)
H1_PAD, H2_PAD = 512, 256       # lane-padded hidden dims
LRELU_SLOPE = 0.01
BN_EPS = 1e-5
NORM_EPS = 1e-12                # rsqrt guard in the meta-gradient

_VMEM = pl.BlockSpec(memory_space=pltpu.MemorySpace.VMEM)


def _leaky_relu(x):
    # one vmul + vmax instead of cmp + select
    return jnp.maximum(x, LRELU_SLOPE * x)


def _pad_lanes(x, width):
    """Zero-pad the last (lane) axis up to `width`.  One-time upstream prep only."""
    pad = width - x.shape[-1]
    if pad == 0:
        return x
    return jnp.concatenate([x, jnp.zeros(x.shape[:-1] + (pad,), x.dtype)], axis=-1)


# ---------------------------------------------------------------------------
# Shared math: used inside the fused kernel AND as the pure-JAX reference.
#   se*/sn*: flat [T*few, D_PAD] bf16 (head / tail already separate, never concatenated)
#   qe*/ne*: [T, num, D_PAD] bf16
# ---------------------------------------------------------------------------
def _metar_math(se1, se2, sn1, sn2, qe1, qe2, ne1, ne2,
                w1h, w1t, b1, w2, b2, w3, b3,
                *, few, margin, beta, grad_scale):
    # --- RelationMetaLearner MLP (BN folded into w/b; dropout = identity in eval).
    #     bf16 MXU operands, f32 accumulation, f32 elementwise.
    #     Two K=D_PAD dots replace one K=2*D_PAD dot on a concatenated input. ---
    h = (jnp.dot(se1, w1h, preferred_element_type=jnp.float32)
         + jnp.dot(se2, w1t, preferred_element_type=jnp.float32) + b1)
    h = _leaky_relu(h)
    h = jnp.dot(h.astype(jnp.bfloat16), w2, preferred_element_type=jnp.float32) + b2
    h = _leaky_relu(h)
    h = jnp.dot(h.astype(jnp.bfloat16), w3, preferred_element_type=jnp.float32) + b3  # [T*few, D_PAD]

    # upcast support once; all meta-grad math is f32
    se1f, se2f = se1.astype(jnp.float32), se2.astype(jnp.float32)
    sn1f, sn2f = sn1.astype(jnp.float32), sn2.astype(jnp.float32)

    n_tasks = h.shape[0] // few
    rel_q_rows = []
    # Static unroll over tasks: contiguous row blocks, sublane reductions.  No tile-crossing
    # [T*few,128]->[T,few,128] reshape; per-task temporaries bound vreg live ranges.
    for b in range(n_tasks):
        rows = slice(b * few, (b + 1) * few)
        rel_b = jnp.mean(h[rows], axis=0, keepdims=True)                 # [1, D_PAD]
        dp = se1f[rows] + rel_b - se2f[rows]                             # [few, D_PAD]
        dn = sn1f[rows] + rel_b - sn2f[rows]
        ssq_p = jnp.sum(dp * dp, axis=-1, keepdims=True)                 # [few, 1]
        ssq_n = jnp.sum(dn * dn, axis=-1, keepdims=True)
        norm_p = jnp.sqrt(ssq_p)                                         # exact norms for hinge
        norm_n = jnp.sqrt(ssq_n)
        inv_p = jax.lax.rsqrt(ssq_p + NORM_EPS)                          # EUP, NaN-guarded grad
        inv_n = jax.lax.rsqrt(ssq_n + NORM_EPS)
        # loss = mean(relu(margin - (p_score - n_score))), p = -norm_p, n = -norm_n
        active = (norm_p - norm_n + margin > 0).astype(jnp.float32)      # [few, 1]
        grad_b = jnp.sum(active * (dp * inv_p - dn * inv_n),
                         axis=0, keepdims=True) * grad_scale             # [1, D_PAD]
        rel_q_rows.append(rel_b - beta * grad_b)
    rel_q = rel_q_rows[0] if n_tasks == 1 else jnp.concatenate(rel_q_rows, axis=0)  # [T, D_PAD]

    # --- EmbeddingLearner: score = -||e1 + rel_q - e2||_2 (exact, f32) ---
    qd = qe1.astype(jnp.float32) + rel_q[:, None, :] - qe2.astype(jnp.float32)
    nd = ne1.astype(jnp.float32) + rel_q[:, None, :] - ne2.astype(jnp.float32)
    p_sc = -jnp.sqrt(jnp.sum(qd * qd, axis=-1))                          # [T, num_q]
    n_sc = -jnp.sqrt(jnp.sum(nd * nd, axis=-1))                          # [T, num_n]
    return p_sc, n_sc


# ---------------------------------------------------------------------------
# Fused MetaR kernel (one grid step = TB tasks)
# ---------------------------------------------------------------------------
def metar_fused_kernel(w1h_ref, w1t_ref, b1_ref, w2_ref, b2_ref, w3_ref, b3_ref,
                       se1_ref, se2_ref, sn1_ref, sn2_ref,
                       qe1_ref, qe2_ref, ne1_ref, ne2_ref,
                       p_ref, n_ref, *, few, margin, beta, grad_scale):
    p_sc, n_sc = _metar_math(
        se1_ref[...], se2_ref[...], sn1_ref[...], sn2_ref[...],
        qe1_ref[...], qe2_ref[...], ne1_ref[...], ne2_ref[...],
        w1h_ref[...], w1t_ref[...], b1_ref[...], w2_ref[...], b2_ref[...],
        w3_ref[...], b3_ref[...],
        few=few, margin=margin, beta=beta, grad_scale=grad_scale)
    p_ref[...] = p_sc[None]
    n_ref[...] = n_sc[None]


# ---------------------------------------------------------------------------
# Standalone EmbeddingLearner kernel (the module spec): h, t, r, pos_num
# ---------------------------------------------------------------------------
def embedding_learner_kernel(h_ref, t_ref, r_ref, p_ref, n_ref, *, pos_num):
    d = h_ref[...] + r_ref[...] - t_ref[...]          # r broadcasts over the pair axis if [B,1,D]
    score = -jnp.sqrt(jnp.sum(d * d, axis=-1))        # [B, N]
    p_ref[...] = score[:, :pos_num]
    n_ref[...] = score[:, pos_num:]


def embedding_learner(h, t, r, pos_num):
    """Exact EmbeddingLearner.forward.  h, t: [B, N, 1, D]; r: [B, N, 1, D] or [B, 1, 1, D].

    No host-side lane padding: full-array (equal-to-dim) blocks are legal, so D=100 ships
    as-is and the only host work is dropping the singleton axis.
    """
    B, N = h.shape[0], h.shape[1]
    hh, tt, rr = h[:, :, 0, :], t[:, :, 0, :], r[:, :, 0, :]
    # TODO(synk): at production N, tile the pair axis with a grid and round pos_num / neg_num
    #             up to lane multiples of 128 so the score stores are unmasked vst.
    return pl.pallas_call(
        functools.partial(embedding_learner_kernel, pos_num=pos_num),
        out_shape=(jax.ShapeDtypeStruct((B, pos_num), jnp.float32),
                   jax.ShapeDtypeStruct((B, N - pos_num), jnp.float32)),
        in_specs=[_VMEM, _VMEM, _VMEM],
        out_specs=(_VMEM, _VMEM),
    )(hh, tt, rr)


# ---------------------------------------------------------------------------
# One-time upstream data prep (simulates a pre-padded bf16 embedding table + flat gather)
# ---------------------------------------------------------------------------
def prepare_embeddings(support, support_negative, query, negative):
    """Pad D -> D_PAD with zeros, cast to bf16, and lay the support set out flat [B*few, D_PAD].

    This is the data-loader / embedding-table layout, NOT per-forward work: meta_r_forward
    does no padding, casting, or concatenation of its own.
    """
    B, few = support.shape[0], support.shape[1]
    assert support_negative.shape[1] == few, "margin ranking pairs support vs support_negative"

    def pad16(x):
        return _pad_lanes(x, D_PAD).astype(jnp.bfloat16)

    sup, sneg = pad16(support), pad16(support_negative)
    que, neg = pad16(query), pad16(negative)
    return {
        "few": few,
        "se1": sup[:, :, 0, :].reshape(B * few, D_PAD),
        "se2": sup[:, :, 1, :].reshape(B * few, D_PAD),
        "sn1": sneg[:, :, 0, :].reshape(B * few, D_PAD),
        "sn2": sneg[:, :, 1, :].reshape(B * few, D_PAD),
        "qe1": que[:, :, 0, :], "qe2": que[:, :, 1, :],
        "ne1": neg[:, :, 0, :], "ne2": neg[:, :, 1, :],
    }


# ---------------------------------------------------------------------------
# Fused MetaR forward: grid over tasks, resident weights, double-buffered task blocks
# ---------------------------------------------------------------------------
def meta_r_forward(emb, params, *, margin, beta, tb=None):
    few = emb["few"]
    M, _ = emb["se1"].shape
    B = M // few
    num_q, num_n = emb["qe1"].shape[1], emb["ne1"].shape[1]

    # Task tile size.  Production: choose tb so tb*few is a multiple of 128 (v5e) /
    # 256 (v6e, v7x) to fill the MXU M dimension; it must always be a multiple of 8.
    if tb is None:
        tb = 1 if few % 8 == 0 else B
    assert B % tb == 0
    assert (tb * few) % 8 == 0 or tb * few == M, "flat support block must be sublane aligned"
    grid_n = B // tb
    grad_scale = 1.0 / (B * few)

    kernel = functools.partial(metar_fused_kernel, few=few, margin=float(margin),
                               beta=float(beta), grad_scale=grad_scale)

    const2 = lambda i: (0, 0)          # weights: resident across the grid
    task2 = lambda i: (i, 0)           # flat support blocks
    task3 = lambda i: (i, 0, 0)        # query / negative / output blocks

    w_specs = [
        pl.BlockSpec((D_PAD, H1_PAD), const2),   # w1 head half
        pl.BlockSpec((D_PAD, H1_PAD), const2),   # w1 tail half
        pl.BlockSpec((1, H1_PAD), const2),       # b1
        pl.BlockSpec((H1_PAD, H2_PAD), const2),  # w2
        pl.BlockSpec((1, H2_PAD), const2),       # b2
        pl.BlockSpec((H2_PAD, D_PAD), const2),   # w3
        pl.BlockSpec((1, D_PAD), const2),        # b3
    ]
    e_specs = ([pl.BlockSpec((tb * few, D_PAD), task2)] * 4
               + [pl.BlockSpec((tb, num_q, D_PAD), task3)] * 2
               + [pl.BlockSpec((tb, num_n, D_PAD), task3)] * 2)

    args = (params["w1h"], params["w1t"], params["b1"], params["w2"], params["b2"],
            params["w3"], params["b3"],
            emb["se1"], emb["se2"], emb["sn1"], emb["sn2"],
            emb["qe1"], emb["qe2"], emb["ne1"], emb["ne2"])

    # Advisory cost estimate so XLA can schedule/overlap this call.
    flops = int(2 * M * D_PAD * H1_PAD * 2          # split first layer (two K=D_PAD dots)
                + 2 * M * H1_PAD * H2_PAD
                + 2 * M * H2_PAD * D_PAD
                + 10 * M * D_PAD                    # meta-grad elementwise
                + 6 * B * (num_q + num_n) * D_PAD)  # scoring elementwise
    transcendentals = int(4 * M + B * (num_q + num_n))
    bytes_accessed = int(sum(int(a.size) * a.dtype.itemsize for a in args)
                         + B * (num_q + num_n) * 4)

    p3, n3 = pl.pallas_call(
        kernel,
        grid_spec=pltpu.PrefetchScalarGridSpec(
            num_scalar_prefetch=0,
            grid=(grid_n,),
            in_specs=w_specs + e_specs,
            out_specs=(pl.BlockSpec((1, tb, num_q), task3),
                       pl.BlockSpec((1, tb, num_n), task3)),
        ),
        out_shape=(jax.ShapeDtypeStruct((grid_n, tb, num_q), jnp.float32),
                   jax.ShapeDtypeStruct((grid_n, tb, num_n), jnp.float32)),
        compiler_params=pltpu.CompilerParams(
            dimension_semantics=("parallel",),            # megacore-shardable task axis
            vmem_limit_bytes=32 * 1024 * 1024),           # explicit budget; v7x-safe (<64 MiB)
        cost_estimate=pl.CostEstimate(flops=flops, transcendentals=transcendentals,
                                      bytes_accessed=bytes_accessed),
    )(*args)
    return p3.reshape(B, num_q), n3.reshape(B, num_n)


def meta_r_reference(emb, params, *, margin, beta):
    """Pure-JAX (XLA) reference of the fused kernel: same bf16 inputs, same folded weights."""
    few = emb["few"]
    B = emb["qe1"].shape[0]
    return _metar_math(emb["se1"], emb["se2"], emb["sn1"], emb["sn2"],
                       emb["qe1"], emb["qe2"], emb["ne1"], emb["ne2"],
                       params["w1h"], params["w1t"], params["b1"],
                       params["w2"], params["b2"], params["w3"], params["b3"],
                       few=few, margin=float(margin), beta=float(beta),
                       grad_scale=1.0 / (B * few))


# ---------------------------------------------------------------------------
# Parameter init: xavier/uniform, eval-BN folded in, zero-padded, w1 split, bf16 weights
# ---------------------------------------------------------------------------
def init_params(key):
    def xavier(k, fi, fo):
        std = (2.0 / (fi + fo)) ** 0.5
        return std * jax.random.normal(k, (fi, fo), jnp.float32)

    def lin_bias(k, fi, fo):
        bound = 1.0 / (fi ** 0.5)
        return jax.random.uniform(k, (1, fo), jnp.float32, -bound, bound)

    ks = jax.random.split(key, 6)
    w1 = xavier(ks[0], 2 * EMBED, H1); b1 = lin_bias(ks[1], 2 * EMBED, H1)
    w2 = xavier(ks[2], H1, H2);        b2 = lin_bias(ks[3], H1, H2)
    w3 = xavier(ks[4], H2, OUT);       b3 = lin_bias(ks[5], H2, OUT)

    # Fold eval-mode BatchNorm1d(few): gamma=1, beta=0, running stats (0, 1)
    #   BN(z) = z / sqrt(1 + eps)  -> fold the scale into the preceding linear layer.
    s = 1.0 / jnp.sqrt(jnp.float32(1.0) + BN_EPS)
    w1, b1 = w1 * s, b1 * s
    w2, b2 = w2 * s, b2 * s
    w3, b3 = w3 * s, b3 * s

    # Zero-pad to lane-aligned shapes and split w1 into head/tail halves so the kernel never
    # needs a concatenated [., 2*D_PAD] input.  Pad columns of w3/b3 are exactly zero so
    # rel/rel_q padding stays zero and L2 norms are unchanged.
    w1h = jnp.zeros((D_PAD, H1_PAD), jnp.float32).at[:EMBED, :H1].set(w1[:EMBED])
    w1t = jnp.zeros((D_PAD, H1_PAD), jnp.float32).at[:EMBED, :H1].set(w1[EMBED:])
    b1p = jnp.zeros((1, H1_PAD), jnp.float32).at[:, :H1].set(b1)
    w2p = jnp.zeros((H1_PAD, H2_PAD), jnp.float32).at[:H1, :H2].set(w2)
    b2p = jnp.zeros((1, H2_PAD), jnp.float32).at[:, :H2].set(b2)
    w3p = jnp.zeros((H2_PAD, D_PAD), jnp.float32).at[:H2, :OUT].set(w3)
    b3p = jnp.zeros((1, D_PAD), jnp.float32).at[:, :OUT].set(b3)

    return {
        "w1h": w1h.astype(jnp.bfloat16), "w1t": w1t.astype(jnp.bfloat16), "b1": b1p,
        "w2": w2p.astype(jnp.bfloat16), "b2": b2p,
        "w3": w3p.astype(jnp.bfloat16), "b3": b3p,
    }


if __name__ == "__main__":
    B, few, num_q, num_n = 2, 8, 4, 4
    key = jax.random.PRNGKey(0)
    k_sup, k_sn, k_q, k_n, k_r, k_par = jax.random.split(key, 6)

    support = jax.random.normal(k_sup, (B, few, 2, EMBED), jnp.float32)
    support_negative = jax.random.normal(k_sn, (B, few, 2, EMBED), jnp.float32)
    query = jax.random.normal(k_q, (B, num_q, 2, EMBED), jnp.float32)
    negative = jax.random.normal(k_n, (B, num_n, 2, EMBED), jnp.float32)
    params = init_params(k_par)

    # --- 1) EmbeddingLearner exactly as specced: (h, t, r, pos_num) -> (p_score, n_score) ---
    h = jnp.concatenate([query[:, :, 0:1, :], negative[:, :, 0:1, :]], axis=1)  # [B, N, 1, D]
    t = jnp.concatenate([query[:, :, 1:2, :], negative[:, :, 1:2, :]], axis=1)  # [B, N, 1, D]
    r = jax.random.normal(k_r, (B, 1, 1, EMBED), jnp.float32)                   # broadcasts
    p_s, n_s = embedding_learner(h, t, r, num_q)
    jax.block_until_ready((p_s, n_s))
    assert p_s.shape == (B, num_q) and n_s.shape == (B, num_n)
    score_ref = -jnp.sqrt(jnp.sum((h + r - t) ** 2, axis=-1))[:, :, 0]          # torch.norm(..,2,-1).squeeze(2)
    assert jnp.allclose(p_s, score_ref[:, :num_q], atol=1e-4, rtol=1e-5)
    assert jnp.allclose(n_s, score_ref[:, num_q:], atol=1e-4, rtol=1e-5)

    # --- 2) fused MetaR forward (one pallas_call, task grid) vs pure-JAX reference ---
    # One-time upstream prep (pre-padded bf16 embedding layout); not per-forward work.
    emb = prepare_embeddings(support, support_negative, query, negative)
    p_score, n_score = meta_r_forward(emb, params, margin=1.0, beta=5.0)
    jax.block_until_ready((p_score, n_score))
    assert p_score.shape == (B, num_q) and n_score.shape == (B, num_n)
    p_xla, n_xla = meta_r_reference(emb, params, margin=1.0, beta=5.0)
    assert jnp.allclose(p_score, p_xla, atol=2e-2, rtol=2e-2)
    assert jnp.allclose(n_score, n_xla, atol=2e-2, rtol=2e-2)
    assert bool(jnp.all(jnp.isfinite(p_score))) and bool(jnp.all(jnp.isfinite(n_score)))

    print("KERNEL_OK")
</pallas_src>

<mosaic_0001>
module attributes {stable_mosaic.version = 11 : i64} {
  func.func @embedding_learner_kernel(%arg0: memref<2x8x100xf32, #tpu.memory_space<vmem>>, %arg1: memref<2x8x100xf32, #tpu.memory_space<vmem>>, %arg2: memref<2x1x100xf32, #tpu.memory_space<vmem>>, %arg3: memref<2x4xf32, #tpu.memory_space<vmem>>, %arg4: memref<2x4xf32, #tpu.memory_space<vmem>>) attributes {dimension_semantics = [], scalar_prefetch = 0 : i64, scratch_operands = 0 : i64, tpu.core_type = #tpu.core_type<tc>} {
    %c0 = arith.constant 0 : index
    %c0_0 = arith.constant 0 : index
    %c0_1 = arith.constant 0 : index
    %0 = vector.load %arg0[%c0, %c0_0, %c0_1] : memref<2x8x100xf32, #tpu.memory_space<vmem>>, vector<2x8x100xf32>
    %c0_2 = arith.constant 0 : index
    %c0_3 = arith.constant 0 : index
    %c0_4 = arith.constant 0 : index
    %1 = vector.load %arg2[%c0_2, %c0_3, %c0_4] : memref<2x1x100xf32, #tpu.memory_space<vmem>>, vector<2x1x100xf32>
    %2 = vector.broadcast %1 : vector<2x1x100xf32> to vector<2x8x100xf32>
    %3 = arith.addf %0, %2 : vector<2x8x100xf32>
    %c0_5 = arith.constant 0 : index
    %c0_6 = arith.constant 0 : index
    %c0_7 = arith.constant 0 : index
    %4 = vector.load %arg1[%c0_5, %c0_6, %c0_7] : memref<2x8x100xf32, #tpu.memory_space<vmem>>, vector<2x8x100xf32>
    %5 = arith.subf %3, %4 : vector<2x8x100xf32>
    %6 = arith.mulf %5, %5 : vector<2x8x100xf32>
    %cst = arith.constant dense<0.000000e+00> : vector<2x8xf32>
    %7 = vector.multi_reduction <add>, %6, %cst [2] : vector<2x8x100xf32> to vector<2x8xf32>
    %8 = math.sqrt %7 : vector<2x8xf32>
    %cst_8 = arith.constant 0.000000e+00 : f32
    %9 = vector.broadcast %cst_8 : f32 to vector<2x8xf32>
    %10 = arith.subf %9, %8 : vector<2x8xf32>
    %11 = vector.extract_strided_slice %10 {offsets = [0, 0], sizes = [2, 4], strides = [1, 1]} : vector<2x8xf32> to vector<2x4xf32>
    %c0_9 = arith.constant 0 : index
    %c0_10 = arith.constant 0 : index
    %12 = vector.load %arg3[%c0_9, %c0_10] : memref<2x4xf32, #tpu.memory_space<vmem>>, vector<2x4xf32>
    tpu.vector_store %arg3[%c0_9, %c0_10], %11 {strides = array<i32>} : memref<2x4xf32, #tpu.memory_space<vmem>>, vector<2x4xf32>,
    %13 = vector.extract_strided_slice %10 {offsets = [0, 4], sizes = [2, 4], strides = [1, 1]} : vector<2x8xf32> to vector<2x4xf32>
    %c0_11 = arith.constant 0 : index
    %c0_12 = arith.constant 0 : index
    %14 = vector.load %arg4[%c0_11, %c0_12] : memref<2x4xf32, #tpu.memory_space<vmem>>, vector<2x4xf32>
    tpu.vector_store %arg4[%c0_11, %c0_12], %13 {strides = array<i32>} : memref<2x4xf32, #tpu.memory_space<vmem>>, vector<2x4xf32>,
    return
  }
}

</mosaic_0001>

<llo_original>
// kernel: tpu_custom_call.1
$region0: #{tpu_custom_call.1}
  #allocation0 [shape = 'u32[]', space=smem, size = 0x4, offset = 0x4, fixed_abs, tag = 'smem constant byte address 0x4 - core index']
  #allocation1 [shape = 'u32[144,128]{1,0:T(1,128)}', space=vmem, size = 0x12000, scoped, tag = 'internal scratch']
  %s0 = inlined_call_operand.hbm [shape: f32[2,8,100], index: 0, kind: input, shape index: {}]
  %s1 = inlined_call_operand.hbm [shape: f32[2,8,100], index: 1, kind: input, shape index: {}]
  %s2 = inlined_call_operand.vmem [shape: f32[2,1,100], index: 2, kind: input, shape index: {}]
  %s3 = inlined_call_operand.hbm [shape: f32[2,4], index: 3, kind: output, shape index: {0}]
  %s4 = inlined_call_operand.hbm [shape: f32[2,4], index: 4, kind: output, shape index: {1}]
  %5 = xla_tuple %s3, %s4
  %s6 = sld [smem:[#allocation0]]
  $region38: #{tpu_custom_call.1} parent=0
    _
  %s8 = ssub.s32 1, %s6
  %s9 = scalar_select 0, %s8, %s6
  $region1: #{tpu_custom_call.1} parent=0
    #allocation2 [shape = 'u8[8192]{0}', space=vmem, size = 0x2000, scoped, tag = 'input window, operand 0, single buffered']
    #allocation3 [shape = 's32[1]{0}', space=sflag, size = 0x4, scoped, tag = 'scoped memory for tpu_custom_call.1']
    #allocation4 [shape = 's32[1]{0}', space=sflag, size = 0x4, scoped, tag = 'scoped memory for tpu_custom_call.1']
    #allocation5 [shape = 'u8[8192]{0}', space=vmem, size = 0x2000, scoped, tag = 'input window, operand 1, single buffered']
    #allocation6 [shape = 's32[1]{0}', space=sflag, size = 0x4, scoped, tag = 'scoped memory for tpu_custom_call.1']
    #allocation7 [shape = 'u8[1024]{0}', space=vmem, size = 0x400, scoped, tag = 'output window, operand 0, single buffered']
    #allocation8 [shape = 'u8[1024]{0}', space=vmem, size = 0x400, scoped, tag = 'output window, operand 1, single buffered']
    #allocation9 [shape = 's32[1]{0}', space=sflag, size = 0x4, scoped, tag = 'scoped memory for tpu_custom_call.1']
    %10 = vsyncpa [#allocation3], 0
    %11 = vsyncpa [#allocation6], 0
    %12 = vsyncpa [#allocation4], 0
    %13 = vsyncpa [#allocation9], 0
    // Predicated region
    $region2: #{tpu_custom_call.1} parent=1 // pred_check
      _
    $region3: #{tpu_custom_call.1} parent=1 // pred_check_branch
      %15 = sbr.rel (0) target = $region5
    $region4: #{tpu_custom_call.1} parent=1 // pred_region
      %s17 = ssub.s32 256, 256
      %18 = vsyncadd [#allocation3], %s17
      %s19 = sshll.u32 [#allocation2], 4
      %s20 = int_to_ptr.vmem [resolvable:$true] %s19
      %25 = dma.hbm_to_vmem [thread:$0]  %s0, 256, %s20, [#allocation3], 128, 128, 8
    $region5: #{tpu_custom_call.1} parent=1 // pred_fallthru
      _
    // Predicated region
    $region6: #{tpu_custom_call.1} parent=1 // pred_check
      _
    $region7: #{tpu_custom_call.1} parent=1 // pred_check_branch
      %27 = sbr.rel (0) target = $region9
    $region8: #{tpu_custom_call.1} parent=1 // pred_region
      %s29 = ssub.s32 256, 256
      %30 = vsyncadd [#allocation6], %s29
      %s31 = sshll.u32 [#allocation5], 4
      %s32 = int_to_ptr.vmem [resolvable:$true] %s31
      %37 = dma.hbm_to_vmem [thread:$0]  %s1, 256, %s32, [#allocation6], 128, 128, 8
    $region9: #{tpu_custom_call.1} parent=1 // pred_fallthru
      _
    // Predicated region
    $region10: #{tpu_custom_call.1} parent=1 // pred_check
      _
    $region11: #{tpu_custom_call.1} parent=1 // pred_check_branch
      %39 = sbr.rel (0) target = $region13
    $region12: #{tpu_custom_call.1} parent=1 // pred_region
      _
    $region13: #{tpu_custom_call.1} parent=1 // pred_fallthru
      _
    // Predicated region
    $region14: #{tpu_custom_call.1} parent=1 // pred_check
      _
    $region15: #{tpu_custom_call.1} parent=1 // pred_check_branch
      %41 = sbr.rel (0) target = $region17
    $region16: #{tpu_custom_call.1} parent=1 // pred_region
      %42 = dma.done [#allocation3], 256
    $region17: #{tpu_custom_call.1} parent=1 // pred_fallthru
      _
    // Predicated region
    $region18: #{tpu_custom_call.1} parent=1 // pred_check
      _
    $region19: #{tpu_custom_call.1} parent=1 // pred_check_branch
      %44 = sbr.rel (0) target = $region21
    $region20: #{tpu_custom_call.1} parent=1 // pred_region
      %45 = dma.done [#allocation6], 256
    $region21: #{tpu_custom_call.1} parent=1 // pred_fallthru
      _
    %v46 = vld [vmem:[#allocation2] sm:$0xff]
    %v47 = vld [vmem:[#allocation2 + $0x8] sm:$0xff]
    %v48 = vld [vmem:[%s2] sm:$0x1]
    %v49 = vld [vmem:[%s2 + $0x1] sm:$0x1]
    %v52 = vlaneseq
    %v53 = vshrl.u32 %v52, 7
    %v54 = vsub.s32 0, %v53
    %v55 = vrot.slane %v48, %v54
    %v56 = vlaneseq
    %v57 = vshrl.u32 %v56, 7
    %v58 = vsub.s32 0, %v57
    %v59 = vrot.slane %v49, %v58
    %v62 = vadd.f32 %v46, %v55
    %v63 = vadd.f32 %v47, %v59
    %v64 = vld [vmem:[#allocation5] sm:$0xff]
    %v65 = vld [vmem:[#allocation5 + $0x8] sm:$0xff]
    %v66 = vsub.f32 %v62, %v64
    %v67 = vsub.f32 %v63, %v65
    %v68 = vmul.f32 %v66, %v66
    %v69 = vmul.f32 %v67, %v67
    %vm70 = vcmask 818176
    %v71 = vsel %vm70, %v68, 0.0
    %72 = vadd.xlane.f32.xlu0 %v71
    %v73 = vpop.xlane.xlu0 %72
    %v74 = vsel %vm70, %v69, 0.0
    %75 = vadd.xlane.f32.xlu0 %v74
    %v76 = vpop.xlane.xlu0 %75
    %v77 = vrsqrt.pop %v73
    %v78 = vmul.f32 %v73, %v77
    %vm79 = vcmp.eq.f32.partialorder %v73, inf
    %v80 = vsel %vm79, %v73, %v78
    %vm81 = vcmp.eq.f32.partialorder %v73, 0.0
    %v82 = vand.u32 %v73, 2147483648
    %v83 = vsel %vm81, %v82, %v80
    %v84 = vrsqrt.pop %v76
    %v85 = vmul.f32 %v76, %v84
    %vm86 = vcmp.eq.f32.partialorder %v76, inf
    %v87 = vsel %vm86, %v76, %v85
    %vm88 = vcmp.eq.f32.partialorder %v76, 0.0
    %v89 = vand.u32 %v76, 2147483648
    %v90 = vsel %vm88, %v89, %v87
    %v91 = vsub.f32 0.0, %v83
    %v92 = vsub.f32 0.0, %v90
    %v95 = vlaneseq
    %v96 = vand.u32 %v95, 127
    %v97 = vlaneseq
    %v98 = vshrl.u32 %v97, 7
    %v99 = vsub.s32 %v96, %v98
    %v100 = vrot.slane %v91, %v99
    %v101 = vlaneseq
    %v102 = vshrl.u32 %v101, 7
    %v103 = vsub.s32 %v96, %v102
    %v104 = vrot.slane %v92, %v103
    %vm105 = vcmask 1041409
    %v106 = vsel %vm105, %v104, %v100
    %vm108 = vcmask 25600
    %109 = vst.msk [vmem:[#allocation7] sm:$0x3] %vm108, %v106
    %v110 = vadd.s32 %v96, 4
    %v111 = vlaneseq
    %v112 = vshrl.u32 %v111, 7
    %v113 = vsub.s32 %v110, %v112
    %v114 = vrot.slane %v91, %v113
    %v115 = vlaneseq
    %v116 = vshrl.u32 %v115, 7
    %v117 = vsub.s32 %v110, %v116
    %v118 = vrot.slane %v92, %v117
    %vm119 = vcmask 1045509
    %v120 = vsel %vm119, %v118, %v114
    %vm122 = vcmask 29700
    %123 = vst.msk [vmem:[#allocation8 - $0x4] sm:$0x30] %vm122, %v120
    // Predicated region
    $region22: #{tpu_custom_call.1} parent=1 // pred_check
      _
    $region23: #{tpu_custom_call.1} parent=1 // pred_check_branch
      %125 = sbr.rel (0) target = $region25
    $region24: #{tpu_custom_call.1} parent=1 // pred_region
      %s127 = ssub.s32 32, 32
      %128 = vsyncadd [#allocation4], %s127
      %s130 = sshll.u32 [#allocation7], 4
      %s131 = int_to_ptr.vmem [resolvable:$true] %s130
      %133 = dma.vmem_to_hbm [thread:$0]  %s131, 32, %s3, [#allocation4]
    $region25: #{tpu_custom_call.1} parent=1 // pred_fallthru
      _
    // Predicated region
    $region26: #{tpu_custom_call.1} parent=1 // pred_check
      _
    $region27: #{tpu_custom_call.1} parent=1 // pred_check_branch
      %135 = sbr.rel (0) target = $region29
    $region28: #{tpu_custom_call.1} parent=1 // pred_region
      %s137 = ssub.s32 32, 32
      %138 = vsyncadd [#allocation9], %s137
      %s140 = sshll.u32 [#allocation8], 4
      %s141 = int_to_ptr.vmem [resolvable:$true] %s140
      %143 = dma.vmem_to_hbm [thread:$0]  %s141, 32, %s4, [#allocation9]
    $region29: #{tpu_custom_call.1} parent=1 // pred_fallthru
      _
    // Predicated region
    $region30: #{tpu_custom_call.1} parent=1 // pred_check
      _
    $region31: #{tpu_custom_call.1} parent=1 // pred_check_branch
      %145 = sbr.rel (0) target = $region33
    $region32: #{tpu_custom_call.1} parent=1 // pred_region
      %146 = dma.done [#allocation4], 32
    $region33: #{tpu_custom_call.1} parent=1 // pred_fallthru
      _
    // Predicated region
    $region34: #{tpu_custom_call.1} parent=1 // pred_check
      _
    $region35: #{tpu_custom_call.1} parent=1 // pred_check_branch
      %148 = sbr.rel (0) target = $region37
    $region36: #{tpu_custom_call.1} parent=1 // pred_region
      %149 = dma.done [#allocation9], 32
    $region37: #{tpu_custom_call.1} parent=1 // pred_fallthru
      _
    %150 = vsyncpa [#allocation3], 1
    %151 = vsyncpa [#allocation6], 1
    %152 = vsyncpa [#allocation4], 1
    %153 = vsyncpa [#allocation9], 1

</llo_original>
